<compile_context>
chip_gen: v7x
topology: tpu7x:2x2x1
jax: 0.10.0
libtpu: 0.0.40
codegen_flags: <defaults>
</compile_context>

<pallas_src>
import functools

import jax
import jax.numpy as jnp
from jax import lax
from jax.experimental import pallas as pl
from jax.experimental.pallas import tpu as pltpu  # noqa: F401  (kept for scaling variants)


def lstm_kernel(x_ref, wx_ref, wh_ref, b_ref, lw_ref, lb_ref, out_ref,
                *, seq_len, hidden):
    # x_ref : (B, T)    input sequence (input_size == 1, trailing dim dropped)
    # wx_ref: (1, 4H)   fused input weights,  gate order [i, f, o, g] along 4H
    # wh_ref: (H, 4H)   fused hidden weights
    # b_ref : (1, 4H)   fused bias (b_ih + b_hh)
    # lw_ref: (O, H)    final linear weight (O == 1)
    # lb_ref: (1, O)    final linear bias
    # out_ref: (B, O)
    T, H = seq_len, hidden
    B = x_ref.shape[0]

    x = x_ref[...]                      # (B, T) -- one vreg at these shapes
    wx = wx_ref[...]                    # (1, 4H)
    b = b_ref[...]                      # (1, 4H)
    wh = wh_ref[...]                    # (H, 4H) resident across the recurrence

    # 0.5 on the three sigmoid gates [i, f, o], 1.0 on the tanh gate [g].
    # Compile-time constant (hoisted), lets one tanh cover the whole (B, 4H) slab.
    gate_scale = jnp.concatenate(
        [jnp.full((1, 3 * H), 0.5, jnp.float32),
         jnp.ones((1, H), jnp.float32)], axis=-1)

    h = jnp.zeros((B, H), jnp.float32)
    c = jnp.zeros((B, H), jnp.float32)

    # T is static and small: fully unrolled.  The chain h_t -> step t+1 is strictly
    # serial, so per-step latency is the only thing that matters here.
    for t in range(T):
        # Input projection for step t: I == 1 => broadcast outer product on the VPU.
        x_t = x[:, t:t + 1]                                   # (B, 1), static slice
        gates = x_t * wx + b + jnp.dot(h, wh, preferred_element_type=jnp.float32)
        # sigmoid(z) = 0.5*(tanh(z/2)+1); the /2 lives in gate_scale, so this is a
        # single EUP tanh pass over all four gates.
        t_all = jnp.tanh(gates * gate_scale)                  # (B, 4H)
        sig = 0.5 * t_all[:, :3 * H] + 0.5                    # contiguous [i, f, o]
        i_g = sig[:, 0 * H:1 * H]
        f_g = sig[:, 1 * H:2 * H]
        o_g = sig[:, 2 * H:3 * H]
        g_g = t_all[:, 3 * H:4 * H]
        c = f_g * c + i_g * g_g
        h = o_g * jnp.tanh(c)

    # Final linear (H -> O = 1): VPU multiply + XLU lane reduction (no N=1 matmul).
    out = jnp.sum(h * lw_ref[...], axis=-1, keepdims=True) + lb_ref[...]
    out_ref[...] = out.astype(out_ref.dtype)


@jax.jit
def lstm_model_forward(x, wx, wh, b, lw, lb):
    """x: (B, T, 1) float32 (batch_first, like PyTorch) -> (B, O) float32."""
    B, T, I = x.shape
    H = wh.shape[0]
    G = wh.shape[1]          # 4H
    O = lb.shape[1]
    if I != 1 or O != 1:
        # TODO(synk): generalize the VPU outer-product projection / lane-reduce head
        # to input_size > 1 or output_size > 1 (falls back to small matmuls).
        raise NotImplementedError("kernel is specialized to input_size=1, output_size=1")

    # Drop the trailing I=1 dim; no transpose HLO, no extra HBM round trip.
    x2 = x.reshape(B, T)

    kernel = functools.partial(lstm_kernel, seq_len=T, hidden=H)

    cost = pl.CostEstimate(
        flops=T * (2 * B * H * G + 12 * B * G) + 2 * B * H * O,
        transcendentals=T * B * (G + H),
        bytes_accessed=4 * (B * T + I * G + H * G + G + O * H + O + B * O),
    )

    full = lambda shape: pl.BlockSpec(shape, lambda: tuple(0 for _ in shape))
    return pl.pallas_call(
        kernel,
        out_shape=jax.ShapeDtypeStruct((B, O), jnp.float32),
        in_specs=[
            full((B, T)),
            full((I, G)),
            full((H, G)),
            full((1, G)),
            full((O, H)),
            full((1, O)),
        ],
        out_specs=full((B, O)),
        cost_estimate=cost,
    )(x2, wx, wh, b, lw, lb)


def init_params(key, input_size=1, hidden_size=64, output_size=1):
    """Deterministic init mirroring PyTorch's U(-1/sqrt(H), 1/sqrt(H)), fused layout.

    PyTorch stacks LSTM gate rows as [i, f, g, o]; we permute once here to
    [i, f, o, g] so the three sigmoid gates form one contiguous slab in the kernel.
    """
    H, I, O = hidden_size, input_size, output_size
    ks = jax.random.split(key, 6)
    bound = float(H) ** -0.5
    u = lambda k, shape: jax.random.uniform(k, shape, jnp.float32, -bound, bound)

    weight_ih = u(ks[0], (4 * H, I))   # PyTorch layout, gate rows [i, f, g, o]
    weight_hh = u(ks[1], (4 * H, H))
    bias_ih = u(ks[2], (4 * H,))
    bias_hh = u(ks[3], (4 * H,))
    lin_w = u(ks[4], (O, H))
    lin_b = u(ks[5], (O,))

    # One-time row permutation [i, f, g, o] -> [i, f, o, g] (zero runtime cost).
    perm = jnp.concatenate([jnp.arange(0, 2 * H),
                            jnp.arange(3 * H, 4 * H),
                            jnp.arange(2 * H, 3 * H)])
    wx = weight_ih[perm].T                           # (I, 4H)
    wh = weight_hh[perm].T                           # (H, 4H)
    b = (bias_ih + bias_hh)[perm].reshape(1, 4 * H)  # (1, 4H)
    lw = lin_w                                       # (O, H)
    lb = lin_b.reshape(1, O)                         # (1, O)
    return wx, wh, b, lw, lb


def lstm_model_reference(x, wx, wh, b, lw, lb):
    """Pure-JAX reference with identical LSTM semantics (fused gate order [i,f,o,g])."""
    B, T, I = x.shape
    H = wh.shape[0]

    def step(carry, x_t):
        h, c = carry
        gates = x_t @ wx + h @ wh + b       # (B, 4H)
        i_g = jax.nn.sigmoid(gates[:, 0 * H:1 * H])
        f_g = jax.nn.sigmoid(gates[:, 1 * H:2 * H])
        o_g = jax.nn.sigmoid(gates[:, 2 * H:3 * H])
        g_g = jnp.tanh(gates[:, 3 * H:4 * H])
        c_new = f_g * c + i_g * g_g
        h_new = o_g * jnp.tanh(c_new)
        return (h_new, c_new), None

    (h_last, _), _ = lax.scan(step,
                              (jnp.zeros((B, H), jnp.float32),
                               jnp.zeros((B, H), jnp.float32)),
                              jnp.transpose(x, (1, 0, 2)))
    return jnp.sum(h_last * lw, axis=-1, keepdims=True) + lb


if __name__ == "__main__":
    B, T, I, H, O = 8, 8, 1, 64, 1  # batch, seq, input_size, hidden_size, output_size

    key = jax.random.PRNGKey(0)
    kx, kp = jax.random.split(key)
    x = jax.random.normal(kx, (B, T, I), dtype=jnp.float32)
    wx, wh, b, lw, lb = init_params(kp, input_size=I, hidden_size=H, output_size=O)

    out = lstm_model_forward(x, wx, wh, b, lw, lb)
    out = jax.block_until_ready(out)

    ref = lstm_model_reference(x, wx, wh, b, lw, lb)
    assert out.shape == (B, O), out.shape
    # Kernel computes sigmoid as 0.5*(tanh(z/2)+1); tolerance leaves a little room for
    # the resulting few-ulp differences vs jax.nn.sigmoid.
    assert jnp.allclose(out, ref, atol=2e-5, rtol=1e-5), (out, ref)

    print("KERNEL_OK")
</pallas_src>

<mosaic_0001>
module attributes {stable_mosaic.version = 11 : i64} {
  func.func @lstm_kernel(%arg0: memref<8x8xf32, #tpu.memory_space<vmem>>, %arg1: memref<1x256xf32, #tpu.memory_space<vmem>>, %arg2: memref<64x256xf32, #tpu.memory_space<vmem>>, %arg3: memref<1x256xf32, #tpu.memory_space<vmem>>, %arg4: memref<1x64xf32, #tpu.memory_space<vmem>>, %arg5: memref<1x1xf32, #tpu.memory_space<vmem>>, %arg6: memref<8x1xf32, #tpu.memory_space<vmem>>) attributes {dimension_semantics = [], scalar_prefetch = 0 : i64, scratch_operands = 0 : i64, tpu.core_type = #tpu.core_type<tc>} {
    %c0 = arith.constant 0 : index
    %c0_0 = arith.constant 0 : index
    %0 = vector.load %arg0[%c0, %c0_0] : memref<8x8xf32, #tpu.memory_space<vmem>>, vector<8x8xf32>
    %c0_1 = arith.constant 0 : index
    %c0_2 = arith.constant 0 : index
    %1 = vector.load %arg1[%c0_1, %c0_2] : memref<1x256xf32, #tpu.memory_space<vmem>>, vector<1x256xf32>
    %c0_3 = arith.constant 0 : index
    %c0_4 = arith.constant 0 : index
    %2 = vector.load %arg3[%c0_3, %c0_4] : memref<1x256xf32, #tpu.memory_space<vmem>>, vector<1x256xf32>
    %c0_5 = arith.constant 0 : index
    %c0_6 = arith.constant 0 : index
    %3 = vector.load %arg2[%c0_5, %c0_6] : memref<64x256xf32, #tpu.memory_space<vmem>>, vector<64x256xf32>
    %cst = arith.constant 5.000000e-01 : f32
    %4 = vector.broadcast %cst : f32 to vector<1x192xf32>
    %cst_7 = arith.constant 1.000000e+00 : f32
    %5 = vector.broadcast %cst_7 : f32 to vector<1x64xf32>
    %6 = tpu.concatenate %4, %5 in 1 : vector<1x192xf32>, vector<1x64xf32> -> vector<1x256xf32>
    %cst_8 = arith.constant 0.000000e+00 : f32
    %7 = vector.broadcast %cst_8 : f32 to vector<8x64xf32>
    %cst_9 = arith.constant 0.000000e+00 : f32
    %8 = vector.broadcast %cst_9 : f32 to vector<8x64xf32>
    %9 = vector.extract_strided_slice %0 {offsets = [0, 0], sizes = [8, 1], strides = [1, 1]} : vector<8x8xf32> to vector<8x1xf32>
    %10 = vector.broadcast %9 : vector<8x1xf32> to vector<8x256xf32>
    %11 = vector.broadcast %1 : vector<1x256xf32> to vector<8x256xf32>
    %12 = arith.mulf %10, %11 : vector<8x256xf32>
    %13 = vector.broadcast %2 : vector<1x256xf32> to vector<8x256xf32>
    %14 = arith.addf %12, %13 : vector<8x256xf32>
    %cst_10 = arith.constant dense<0.000000e+00> : vector<8x256xf32>
    %15 = tpu.matmul %7, %3, %cst_10 {dimension_numbers = #tpu.dot_dimension_numbers<[1], [0], [0], [1], [0, 0, 1, 1], [], []>} : vector<8x64xf32>, vector<64x256xf32>, vector<8x256xf32> -> vector<8x256xf32>
    %16 = arith.addf %14, %15 : vector<8x256xf32>
    %17 = vector.broadcast %6 : vector<1x256xf32> to vector<8x256xf32>
    %18 = arith.mulf %16, %17 : vector<8x256xf32>
    %19 = math.tanh %18 : vector<8x256xf32>
    %20 = vector.extract_strided_slice %19 {offsets = [0, 0], sizes = [8, 192], strides = [1, 1]} : vector<8x256xf32> to vector<8x192xf32>
    %cst_11 = arith.constant 5.000000e-01 : f32
    %21 = vector.broadcast %cst_11 : f32 to vector<8x192xf32>
    %22 = arith.mulf %21, %20 : vector<8x192xf32>
    %cst_12 = arith.constant 5.000000e-01 : f32
    %23 = vector.broadcast %cst_12 : f32 to vector<8x192xf32>
    %24 = arith.addf %22, %23 : vector<8x192xf32>
    %25 = vector.extract_strided_slice %24 {offsets = [0, 0], sizes = [8, 64], strides = [1, 1]} : vector<8x192xf32> to vector<8x64xf32>
    %26 = vector.extract_strided_slice %24 {offsets = [0, 64], sizes = [8, 64], strides = [1, 1]} : vector<8x192xf32> to vector<8x64xf32>
    %27 = vector.extract_strided_slice %24 {offsets = [0, 128], sizes = [8, 64], strides = [1, 1]} : vector<8x192xf32> to vector<8x64xf32>
    %28 = vector.extract_strided_slice %19 {offsets = [0, 192], sizes = [8, 64], strides = [1, 1]} : vector<8x256xf32> to vector<8x64xf32>
    %29 = arith.mulf %26, %8 : vector<8x64xf32>
    %30 = arith.mulf %25, %28 : vector<8x64xf32>
    %31 = arith.addf %29, %30 : vector<8x64xf32>
    %32 = math.tanh %31 : vector<8x64xf32>
    %33 = arith.mulf %27, %32 : vector<8x64xf32>
    %34 = vector.extract_strided_slice %0 {offsets = [0, 1], sizes = [8, 1], strides = [1, 1]} : vector<8x8xf32> to vector<8x1xf32>
    %35 = vector.broadcast %34 : vector<8x1xf32> to vector<8x256xf32>
    %36 = vector.broadcast %1 : vector<1x256xf32> to vector<8x256xf32>
    %37 = arith.mulf %35, %36 : vector<8x256xf32>
    %38 = vector.broadcast %2 : vector<1x256xf32> to vector<8x256xf32>
    %39 = arith.addf %37, %38 : vector<8x256xf32>
    %cst_13 = arith.constant dense<0.000000e+00> : vector<8x256xf32>
    %40 = tpu.matmul %33, %3, %cst_13 {dimension_numbers = #tpu.dot_dimension_numbers<[1], [0], [0], [1], [0, 0, 1, 1], [], []>} : vector<8x64xf32>, vector<64x256xf32>, vector<8x256xf32> -> vector<8x256xf32>
    %41 = arith.addf %39, %40 : vector<8x256xf32>
    %42 = vector.broadcast %6 : vector<1x256xf32> to vector<8x256xf32>
    %43 = arith.mulf %41, %42 : vector<8x256xf32>
    %44 = math.tanh %43 : vector<8x256xf32>
    %45 = vector.extract_strided_slice %44 {offsets = [0, 0], sizes = [8, 192], strides = [1, 1]} : vector<8x256xf32> to vector<8x192xf32>
    %cst_14 = arith.constant 5.000000e-01 : f32
    %46 = vector.broadcast %cst_14 : f32 to vector<8x192xf32>
    %47 = arith.mulf %46, %45 : vector<8x192xf32>
    %cst_15 = arith.constant 5.000000e-01 : f32
    %48 = vector.broadcast %cst_15 : f32 to vector<8x192xf32>
    %49 = arith.addf %47, %48 : vector<8x192xf32>
    %50 = vector.extract_strided_slice %49 {offsets = [0, 0], sizes = [8, 64], strides = [1, 1]} : vector<8x192xf32> to vector<8x64xf32>
    %51 = vector.extract_strided_slice %49 {offsets = [0, 64], sizes = [8, 64], strides = [1, 1]} : vector<8x192xf32> to vector<8x64xf32>
    %52 = vector.extract_strided_slice %49 {offsets = [0, 128], sizes = [8, 64], strides = [1, 1]} : vector<8x192xf32> to vector<8x64xf32>
    %53 = vector.extract_strided_slice %44 {offsets = [0, 192], sizes = [8, 64], strides = [1, 1]} : vector<8x256xf32> to vector<8x64xf32>
    %54 = arith.mulf %51, %31 : vector<8x64xf32>
    %55 = arith.mulf %50, %53 : vector<8x64xf32>
    %56 = arith.addf %54, %55 : vector<8x64xf32>
    %57 = math.tanh %56 : vector<8x64xf32>
    %58 = arith.mulf %52, %57 : vector<8x64xf32>
    %59 = vector.extract_strided_slice %0 {offsets = [0, 2], sizes = [8, 1], strides = [1, 1]} : vector<8x8xf32> to vector<8x1xf32>
    %60 = vector.broadcast %59 : vector<8x1xf32> to vector<8x256xf32>
    %61 = vector.broadcast %1 : vector<1x256xf32> to vector<8x256xf32>
    %62 = arith.mulf %60, %61 : vector<8x256xf32>
    %63 = vector.broadcast %2 : vector<1x256xf32> to vector<8x256xf32>
    %64 = arith.addf %62, %63 : vector<8x256xf32>
    %cst_16 = arith.constant dense<0.000000e+00> : vector<8x256xf32>
    %65 = tpu.matmul %58, %3, %cst_16 {dimension_numbers = #tpu.dot_dimension_numbers<[1], [0], [0], [1], [0, 0, 1, 1], [], []>} : vector<8x64xf32>, vector<64x256xf32>, vector<8x256xf32> -> vector<8x256xf32>
    %66 = arith.addf %64, %65 : vector<8x256xf32>
    %67 = vector.broadcast %6 : vector<1x256xf32> to vector<8x256xf32>
    %68 = arith.mulf %66, %67 : vector<8x256xf32>
    %69 = math.tanh %68 : vector<8x256xf32>
    %70 = vector.extract_strided_slice %69 {offsets = [0, 0], sizes = [8, 192], strides = [1, 1]} : vector<8x256xf32> to vector<8x192xf32>
    %cst_17 = arith.constant 5.000000e-01 : f32
    %71 = vector.broadcast %cst_17 : f32 to vector<8x192xf32>
    %72 = arith.mulf %71, %70 : vector<8x192xf32>
    %cst_18 = arith.constant 5.000000e-01 : f32
    %73 = vector.broadcast %cst_18 : f32 to vector<8x192xf32>
    %74 = arith.addf %72, %73 : vector<8x192xf32>
    %75 = vector.extract_strided_slice %74 {offsets = [0, 0], sizes = [8, 64], strides = [1, 1]} : vector<8x192xf32> to vector<8x64xf32>
    %76 = vector.extract_strided_slice %74 {offsets = [0, 64], sizes = [8, 64], strides = [1, 1]} : vector<8x192xf32> to vector<8x64xf32>
    %77 = vector.extract_strided_slice %74 {offsets = [0, 128], sizes = [8, 64], strides = [1, 1]} : vector<8x192xf32> to vector<8x64xf32>
    %78 = vector.extract_strided_slice %69 {offsets = [0, 192], sizes = [8, 64], strides = [1, 1]} : vector<8x256xf32> to vector<8x64xf32>
    %79 = arith.mulf %76, %56 : vector<8x64xf32>
    %80 = arith.mulf %75, %78 : vector<8x64xf32>
    %81 = arith.addf %79, %80 : vector<8x64xf32>
    %82 = math.tanh %81 : vector<8x64xf32>
    %83 = arith.mulf %77, %82 : vector<8x64xf32>
    %84 = vector.extract_strided_slice %0 {offsets = [0, 3], sizes = [8, 1], strides = [1, 1]} : vector<8x8xf32> to vector<8x1xf32>
    %85 = vector.broadcast %84 : vector<8x1xf32> to vector<8x256xf32>
    %86 = vector.broadcast %1 : vector<1x256xf32> to vector<8x256xf32>
    %87 = arith.mulf %85, %86 : vector<8x256xf32>
    %88 = vector.broadcast %2 : vector<1x256xf32> to vector<8x256xf32>
    %89 = arith.addf %87, %88 : vector<8x256xf32>
    %cst_19 = arith.constant dense<0.000000e+00> : vector<8x256xf32>
    %90 = tpu.matmul %83, %3, %cst_19 {dimension_numbers = #tpu.dot_dimension_numbers<[1], [0], [0], [1], [0, 0, 1, 1], [], []>} : vector<8x64xf32>, vector<64x256xf32>, vector<8x256xf32> -> vector<8x256xf32>
    %91 = arith.addf %89, %90 : vector<8x256xf32>
    %92 = vector.broadcast %6 : vector<1x256xf32> to vector<8x256xf32>
    %93 = arith.mulf %91, %92 : vector<8x256xf32>
    %94 = math.tanh %93 : vector<8x256xf32>
    %95 = vector.extract_strided_slice %94 {offsets = [0, 0], sizes = [8, 192], strides = [1, 1]} : vector<8x256xf32> to vector<8x192xf32>
    %cst_20 = arith.constant 5.000000e-01 : f32
    %96 = vector.broadcast %cst_20 : f32 to vector<8x192xf32>
    %97 = arith.mulf %96, %95 : vector<8x192xf32>
    %cst_21 = arith.constant 5.000000e-01 : f32
    %98 = vector.broadcast %cst_21 : f32 to vector<8x192xf32>
    %99 = arith.addf %97, %98 : vector<8x192xf32>
    %100 = vector.extract_strided_slice %99 {offsets = [0, 0], sizes = [8, 64], strides = [1, 1]} : vector<8x192xf32> to vector<8x64xf32>
    %101 = vector.extract_strided_slice %99 {offsets = [0, 64], sizes = [8, 64], strides = [1, 1]} : vector<8x192xf32> to vector<8x64xf32>
    %102 = vector.extract_strided_slice %99 {offsets = [0, 128], sizes = [8, 64], strides = [1, 1]} : vector<8x192xf32> to vector<8x64xf32>
    %103 = vector.extract_strided_slice %94 {offsets = [0, 192], sizes = [8, 64], strides = [1, 1]} : vector<8x256xf32> to vector<8x64xf32>
    %104 = arith.mulf %101, %81 : vector<8x64xf32>
    %105 = arith.mulf %100, %103 : vector<8x64xf32>
    %106 = arith.addf %104, %105 : vector<8x64xf32>
    %107 = math.tanh %106 : vector<8x64xf32>
    %108 = arith.mulf %102, %107 : vector<8x64xf32>
    %109 = vector.extract_strided_slice %0 {offsets = [0, 4], sizes = [8, 1], strides = [1, 1]} : vector<8x8xf32> to vector<8x1xf32>
    %110 = vector.broadcast %109 : vector<8x1xf32> to vector<8x256xf32>
    %111 = vector.broadcast %1 : vector<1x256xf32> to vector<8x256xf32>
    %112 = arith.mulf %110, %111 : vector<8x256xf32>
    %113 = vector.broadcast %2 : vector<1x256xf32> to vector<8x256xf32>
    %114 = arith.addf %112, %113 : vector<8x256xf32>
    %cst_22 = arith.constant dense<0.000000e+00> : vector<8x256xf32>
    %115 = tpu.matmul %108, %3, %cst_22 {dimension_numbers = #tpu.dot_dimension_numbers<[1], [0], [0], [1], [0, 0, 1, 1], [], []>} : vector<8x64xf32>, vector<64x256xf32>, vector<8x256xf32> -> vector<8x256xf32>
    %116 = arith.addf %114, %115 : vector<8x256xf32>
    %117 = vector.broadcast %6 : vector<1x256xf32> to vector<8x256xf32>
    %118 = arith.mulf %116, %117 : vector<8x256xf32>
    %119 = math.tanh %118 : vector<8x256xf32>
    %120 = vector.extract_strided_slice %119 {offsets = [0, 0], sizes = [8, 192], strides = [1, 1]} : vector<8x256xf32> to vector<8x192xf32>
    %cst_23 = arith.constant 5.000000e-01 : f32
    %121 = vector.broadcast %cst_23 : f32 to vector<8x192xf32>
    %122 = arith.mulf %121, %120 : vector<8x192xf32>
    %cst_24 = arith.constant 5.000000e-01 : f32
    %123 = vector.broadcast %cst_24 : f32 to vector<8x192xf32>
    %124 = arith.addf %122, %123 : vector<8x192xf32>
    %125 = vector.extract_strided_slice %124 {offsets = [0, 0], sizes = [8, 64], strides = [1, 1]} : vector<8x192xf32> to vector<8x64xf32>
    %126 = vector.extract_strided_slice %124 {offsets = [0, 64], sizes = [8, 64], strides = [1, 1]} : vector<8x192xf32> to vector<8x64xf32>
    %127 = vector.extract_strided_slice %124 {offsets = [0, 128], sizes = [8, 64], strides = [1, 1]} : vector<8x192xf32> to vector<8x64xf32>
    %128 = vector.extract_strided_slice %119 {offsets = [0, 192], sizes = [8, 64], strides = [1, 1]} : vector<8x256xf32> to vector<8x64xf32>
    %129 = arith.mulf %126, %106 : vector<8x64xf32>
    %130 = arith.mulf %125, %128 : vector<8x64xf32>
    %131 = arith.addf %129, %130 : vector<8x64xf32>
    %132 = math.tanh %131 : vector<8x64xf32>
    %133 = arith.mulf %127, %132 : vector<8x64xf32>
    %134 = vector.extract_strided_slice %0 {offsets = [0, 5], sizes = [8, 1], strides = [1, 1]} : vector<8x8xf32> to vector<8x1xf32>
    %135 = vector.broadcast %134 : vector<8x1xf32> to vector<8x256xf32>
    %136 = vector.broadcast %1 : vector<1x256xf32> to vector<8x256xf32>
    %137 = arith.mulf %135, %136 : vector<8x256xf32>
    %138 = vector.broadcast %2 : vector<1x256xf32> to vector<8x256xf32>
    %139 = arith.addf %137, %138 : vector<8x256xf32>
    %cst_25 = arith.constant dense<0.000000e+00> : vector<8x256xf32>
    %140 = tpu.matmul %133, %3, %cst_25 {dimension_numbers = #tpu.dot_dimension_numbers<[1], [0], [0], [1], [0, 0, 1, 1], [], []>} : vector<8x64xf32>, vector<64x256xf32>, vector<8x256xf32> -> vector<8x256xf32>
    %141 = arith.addf %139, %140 : vector<8x256xf32>
    %142 = vector.broadcast %6 : vector<1x256xf32> to vector<8x256xf32>
    %143 = arith.mulf %141, %142 : vector<8x256xf32>
    %144 = math.tanh %143 : vector<8x256xf32>
    %145 = vector.extract_strided_slice %144 {offsets = [0, 0], sizes = [8, 192], strides = [1, 1]} : vector<8x256xf32> to vector<8x192xf32>
    %cst_26 = arith.constant 5.000000e-01 : f32
    %146 = vector.broadcast %cst_26 : f32 to vector<8x192xf32>
    %147 = arith.mulf %146, %145 : vector<8x192xf32>
    %cst_27 = arith.constant 5.000000e-01 : f32
    %148 = vector.broadcast %cst_27 : f32 to vector<8x192xf32>
    %149 = arith.addf %147, %148 : vector<8x192xf32>
    %150 = vector.extract_strided_slice %149 {offsets = [0, 0], sizes = [8, 64], strides = [1, 1]} : vector<8x192xf32> to vector<8x64xf32>
    %151 = vector.extract_strided_slice %149 {offsets = [0, 64], sizes = [8, 64], strides = [1, 1]} : vector<8x192xf32> to vector<8x64xf32>
    %152 = vector.extract_strided_slice %149 {offsets = [0, 128], sizes = [8, 64], strides = [1, 1]} : vector<8x192xf32> to vector<8x64xf32>
    %153 = vector.extract_strided_slice %144 {offsets = [0, 192], sizes = [8, 64], strides = [1, 1]} : vector<8x256xf32> to vector<8x64xf32>
    %154 = arith.mulf %151, %131 : vector<8x64xf32>
    %155 = arith.mulf %150, %153 : vector<8x64xf32>
    %156 = arith.addf %154, %155 : vector<8x64xf32>
    %157 = math.tanh %156 : vector<8x64xf32>
    %158 = arith.mulf %152, %157 : vector<8x64xf32>
    %159 = vector.extract_strided_slice %0 {offsets = [0, 6], sizes = [8, 1], strides = [1, 1]} : vector<8x8xf32> to vector<8x1xf32>
    %160 = vector.broadcast %159 : vector<8x1xf32> to vector<8x256xf32>
    %161 = vector.broadcast %1 : vector<1x256xf32> to vector<8x256xf32>
    %162 = arith.mulf %160, %161 : vector<8x256xf32>
    %163 = vector.broadcast %2 : vector<1x256xf32> to vector<8x256xf32>
    %164 = arith.addf %162, %163 : vector<8x256xf32>
    %cst_28 = arith.constant dense<0.000000e+00> : vector<8x256xf32>
    %165 = tpu.matmul %158, %3, %cst_28 {dimension_numbers = #tpu.dot_dimension_numbers<[1], [0], [0], [1], [0, 0, 1, 1], [], []>} : vector<8x64xf32>, vector<64x256xf32>, vector<8x256xf32> -> vector<8x256xf32>
    %166 = arith.addf %164, %165 : vector<8x256xf32>
    %167 = vector.broadcast %6 : vector<1x256xf32> to vector<8x256xf32>
    %168 = arith.mulf %166, %167 : vector<8x256xf32>
    %169 = math.tanh %168 : vector<8x256xf32>
    %170 = vector.extract_strided_slice %169 {offsets = [0, 0], sizes = [8, 192], strides = [1, 1]} : vector<8x256xf32> to vector<8x192xf32>
    %cst_29 = arith.constant 5.000000e-01 : f32
    %171 = vector.broadcast %cst_29 : f32 to vector<8x192xf32>
    %172 = arith.mulf %171, %170 : vector<8x192xf32>
    %cst_30 = arith.constant 5.000000e-01 : f32
    %173 = vector.broadcast %cst_30 : f32 to vector<8x192xf32>
    %174 = arith.addf %172, %173 : vector<8x192xf32>
    %175 = vector.extract_strided_slice %174 {offsets = [0, 0], sizes = [8, 64], strides = [1, 1]} : vector<8x192xf32> to vector<8x64xf32>
    %176 = vector.extract_strided_slice %174 {offsets = [0, 64], sizes = [8, 64], strides = [1, 1]} : vector<8x192xf32> to vector<8x64xf32>
    %177 = vector.extract_strided_slice %174 {offsets = [0, 128], sizes = [8, 64], strides = [1, 1]} : vector<8x192xf32> to vector<8x64xf32>
    %178 = vector.extract_strided_slice %169 {offsets = [0, 192], sizes = [8, 64], strides = [1, 1]} : vector<8x256xf32> to vector<8x64xf32>
    %179 = arith.mulf %176, %156 : vector<8x64xf32>
    %180 = arith.mulf %175, %178 : vector<8x64xf32>
    %181 = arith.addf %179, %180 : vector<8x64xf32>
    %182 = math.tanh %181 : vector<8x64xf32>
    %183 = arith.mulf %177, %182 : vector<8x64xf32>
    %184 = vector.extract_strided_slice %0 {offsets = [0, 7], sizes = [8, 1], strides = [1, 1]} : vector<8x8xf32> to vector<8x1xf32>
    %185 = vector.broadcast %184 : vector<8x1xf32> to vector<8x256xf32>
    %186 = vector.broadcast %1 : vector<1x256xf32> to vector<8x256xf32>
    %187 = arith.mulf %185, %186 : vector<8x256xf32>
    %188 = vector.broadcast %2 : vector<1x256xf32> to vector<8x256xf32>
    %189 = arith.addf %187, %188 : vector<8x256xf32>
    %cst_31 = arith.constant dense<0.000000e+00> : vector<8x256xf32>
    %190 = tpu.matmul %183, %3, %cst_31 {dimension_numbers = #tpu.dot_dimension_numbers<[1], [0], [0], [1], [0, 0, 1, 1], [], []>} : vector<8x64xf32>, vector<64x256xf32>, vector<8x256xf32> -> vector<8x256xf32>
    %191 = arith.addf %189, %190 : vector<8x256xf32>
    %192 = vector.broadcast %6 : vector<1x256xf32> to vector<8x256xf32>
    %193 = arith.mulf %191, %192 : vector<8x256xf32>
    %194 = math.tanh %193 : vector<8x256xf32>
    %195 = vector.extract_strided_slice %194 {offsets = [0, 0], sizes = [8, 192], strides = [1, 1]} : vector<8x256xf32> to vector<8x192xf32>
    %cst_32 = arith.constant 5.000000e-01 : f32
    %196 = vector.broadcast %cst_32 : f32 to vector<8x192xf32>
    %197 = arith.mulf %196, %195 : vector<8x192xf32>
    %cst_33 = arith.constant 5.000000e-01 : f32
    %198 = vector.broadcast %cst_33 : f32 to vector<8x192xf32>
    %199 = arith.addf %197, %198 : vector<8x192xf32>
    %200 = vector.extract_strided_slice %199 {offsets = [0, 0], sizes = [8, 64], strides = [1, 1]} : vector<8x192xf32> to vector<8x64xf32>
    %201 = vector.extract_strided_slice %199 {offsets = [0, 64], sizes = [8, 64], strides = [1, 1]} : vector<8x192xf32> to vector<8x64xf32>
    %202 = vector.extract_strided_slice %199 {offsets = [0, 128], sizes = [8, 64], strides = [1, 1]} : vector<8x192xf32> to vector<8x64xf32>
    %203 = vector.extract_strided_slice %194 {offsets = [0, 192], sizes = [8, 64], strides = [1, 1]} : vector<8x256xf32> to vector<8x64xf32>
    %204 = arith.mulf %201, %181 : vector<8x64xf32>
    %205 = arith.mulf %200, %203 : vector<8x64xf32>
    %206 = arith.addf %204, %205 : vector<8x64xf32>
    %207 = math.tanh %206 : vector<8x64xf32>
    %208 = arith.mulf %202, %207 : vector<8x64xf32>
    %c0_34 = arith.constant 0 : index
    %c0_35 = arith.constant 0 : index
    %209 = vector.load %arg4[%c0_34, %c0_35] : memref<1x64xf32, #tpu.memory_space<vmem>>, vector<1x64xf32>
    %210 = vector.broadcast %209 : vector<1x64xf32> to vector<8x64xf32>
    %211 = arith.mulf %208, %210 : vector<8x64xf32>
    %cst_36 = arith.constant dense<0.000000e+00> : vector<8xf32>
    %212 = vector.multi_reduction <add>, %211, %cst_36 [1] : vector<8x64xf32> to vector<8xf32>
    %213 = vector.shape_cast %212 : vector<8xf32> to vector<8x1xf32>
    %c0_37 = arith.constant 0 : index
    %c0_38 = arith.constant 0 : index
    %214 = vector.load %arg5[%c0_37, %c0_38] : memref<1x1xf32, #tpu.memory_space<vmem>>, vector<1x1xf32>
    %215 = vector.broadcast %214 : vector<1x1xf32> to vector<8x1xf32>
    %216 = arith.addf %213, %215 : vector<8x1xf32>
    %c0_39 = arith.constant 0 : index
    %c0_40 = arith.constant 0 : index
    %217 = vector.load %arg6[%c0_39, %c0_40] : memref<8x1xf32, #tpu.memory_space<vmem>>, vector<8x1xf32>
    tpu.vector_store %arg6[%c0_39, %c0_40], %216 {strides = array<i32>} : memref<8x1xf32, #tpu.memory_space<vmem>>, vector<8x1xf32>,
    return
  }
}

</mosaic_0001>

<llo_original>
// kernel: lstm_model_forward.1
$region0: #{lstm_model_forward.1}
  #allocation0 [shape = 'u32[]', space=smem, size = 0x4, offset = 0x4, fixed_abs, tag = 'smem constant byte address 0x4 - core index']
  #allocation1 [shape = 'u32[144,128]{1,0:T(1,128)}', space=vmem, size = 0x12000, scoped, tag = 'internal scratch']
  #allocation2 [shape = 'f32[1,1]{1,0:T(1,128)S(1)}', space=vmem, size = 0x200, scoped, tag = 'scoped memory for lstm_model_forward.1']
  %s0 = inlined_call_operand.hbm [shape: f32[8,8], index: 0, kind: input, shape index: {}]
  %s1 = inlined_call_operand.vmem [shape: f32[1,256], index: 1, kind: input, shape index: {}]
  %s2 = inlined_call_operand.hbm [shape: f32[64,256], index: 2, kind: input, shape index: {}]
  %s3 = inlined_call_operand.vmem [shape: f32[1,256], index: 3, kind: input, shape index: {}]
  %s4 = inlined_call_operand.vmem [shape: f32[1,64], index: 4, kind: input, shape index: {}]
  %s5 = inlined_call_operand.<no memory space> [shape: f32[1,1], index: 5, kind: input, shape index: {}]
  %s6 = inlined_call_operand.vmem [shape: f32[8,1], index: 6, kind: output, shape index: {}]
  %s7 = sld [smem:[#allocation0]]
  $region42: #{lstm_model_forward.1} parent=0
    _
  %s9 = ssub.s32 1, %s7
  %s10 = scalar_select 0, %s9, %s7
  %v11 = vstv %s5
  %12 = vst [vmem:[#allocation2] sm:$0x1] %v11
  $region1: #{lstm_model_forward.1} parent=0
    #allocation3 [shape = 'u8[4096]{0}', space=vmem, size = 0x1000, scoped, tag = 'input window, operand 0, single buffered']
    #allocation4 [shape = 's32[1]{0}', space=sflag, size = 0x4, scoped, tag = 'scoped memory for lstm_model_forward.1']
    #allocation5 [shape = 'u8[65536]{0}', space=vmem, size = 0x10000, scoped, tag = 'input window, operand 2, single buffered']
    #allocation6 [shape = 's32[1]{0}', space=sflag, size = 0x4, scoped, tag = 'scoped memory for lstm_model_forward.1']
    %13 = vsyncpa [#allocation4], 0
    %14 = vsyncpa [#allocation6], 0
    // Predicated region
    $region2: #{lstm_model_forward.1} parent=1 // pred_check
      _
    $region3: #{lstm_model_forward.1} parent=1 // pred_check_branch
      %16 = sbr.rel (0) target = $region5
    $region4: #{lstm_model_forward.1} parent=1 // pred_region
      %s18 = ssub.s32 128, 128
      %19 = vsyncadd [#allocation4], %s18
      %s21 = sshll.u32 [#allocation3], 4
      %s22 = int_to_ptr.vmem [resolvable:$true] %s21
      %24 = dma.hbm_to_vmem [thread:$0]  %s0, 128, %s22, [#allocation4]
    $region5: #{lstm_model_forward.1} parent=1 // pred_fallthru
      _
    // Predicated region
    $region6: #{lstm_model_forward.1} parent=1 // pred_check
      _
    $region7: #{lstm_model_forward.1} parent=1 // pred_check_branch
      %26 = sbr.rel (0) target = $region9
    $region8: #{lstm_model_forward.1} parent=1 // pred_region
      _
    $region9: #{lstm_model_forward.1} parent=1 // pred_fallthru
      _
    // Predicated region
    $region10: #{lstm_model_forward.1} parent=1 // pred_check
      _
    $region11: #{lstm_model_forward.1} parent=1 // pred_check_branch
      %28 = sbr.rel (0) target = $region13
    $region12: #{lstm_model_forward.1} parent=1 // pred_region
      %s30 = ssub.s32 2048, 2048
      %31 = vsyncadd [#allocation6], %s30
      %s32 = sshll.u32 [#allocation5], 4
      %s33 = int_to_ptr.vmem [resolvable:$true] %s32
      %38 = dma.hbm_to_vmem [thread:$0]  %s2, 2048, %s33, [#allocation6], 256, 256, 16
    $region13: #{lstm_model_forward.1} parent=1 // pred_fallthru
      _
    // Predicated region
    $region14: #{lstm_model_forward.1} parent=1 // pred_check
      _
    $region15: #{lstm_model_forward.1} parent=1 // pred_check_branch
      %40 = sbr.rel (0) target = $region17
    $region16: #{lstm_model_forward.1} parent=1 // pred_region
      _
    $region17: #{lstm_model_forward.1} parent=1 // pred_fallthru
      _
    // Predicated region
    $region18: #{lstm_model_forward.1} parent=1 // pred_check
      _
    $region19: #{lstm_model_forward.1} parent=1 // pred_check_branch
      %42 = sbr.rel (0) target = $region21
    $region20: #{lstm_model_forward.1} parent=1 // pred_region
      _
    $region21: #{lstm_model_forward.1} parent=1 // pred_fallthru
      _
    // Predicated region
    $region22: #{lstm_model_forward.1} parent=1 // pred_check
      _
    $region23: #{lstm_model_forward.1} parent=1 // pred_check_branch
      %44 = sbr.rel (0) target = $region25
    $region24: #{lstm_model_forward.1} parent=1 // pred_region
      _
    $region25: #{lstm_model_forward.1} parent=1 // pred_fallthru
      _
    // Predicated region
    $region26: #{lstm_model_forward.1} parent=1 // pred_check
      _
    $region27: #{lstm_model_forward.1} parent=1 // pred_check_branch
      %46 = sbr.rel (0) target = $region29
    $region28: #{lstm_model_forward.1} parent=1 // pred_region
      %47 = dma.done [#allocation4], 128
    $region29: #{lstm_model_forward.1} parent=1 // pred_fallthru
      _
    // Predicated region
    $region30: #{lstm_model_forward.1} parent=1 // pred_check
      _
    $region31: #{lstm_model_forward.1} parent=1 // pred_check_branch
      %49 = sbr.rel (0) target = $region33
    $region32: #{lstm_model_forward.1} parent=1 // pred_region
      %50 = dma.done [#allocation6], 2048
    $region33: #{lstm_model_forward.1} parent=1 // pred_fallthru
      _
    %v51 = vld [vmem:[#allocation3] sm:$0xff]
    %v52 = vld [vmem:[%s1] sm:$0x3]
    %v53 = vld [vmem:[%s3] sm:$0x3]
    %v54 = vld [vmem:[#allocation5] sm:$0xff]
    %v55 = vld [vmem:[#allocation5 + $0x8] sm:$0xff]
    %v56 = vld [vmem:[#allocation5 + $0x10] sm:$0xff]
    %v57 = vld [vmem:[#allocation5 + $0x18] sm:$0xff]
    %v58 = vld [vmem:[#allocation5 + $0x20] sm:$0xff]
    %v59 = vld [vmem:[#allocation5 + $0x28] sm:$0xff]
    %v60 = vld [vmem:[#allocation5 + $0x30] sm:$0xff]
    %v61 = vld [vmem:[#allocation5 + $0x38] sm:$0xff]
    %v62 = vld [vmem:[#allocation5 + $0x40] sm:$0xff]
    %v63 = vld [vmem:[#allocation5 + $0x48] sm:$0xff]
    %v64 = vld [vmem:[#allocation5 + $0x50] sm:$0xff]
    %v65 = vld [vmem:[#allocation5 + $0x58] sm:$0xff]
    %v66 = vld [vmem:[#allocation5 + $0x60] sm:$0xff]
    %v67 = vld [vmem:[#allocation5 + $0x68] sm:$0xff]
    %v68 = vld [vmem:[#allocation5 + $0x70] sm:$0xff]
    %v69 = vld [vmem:[#allocation5 + $0x78] sm:$0xff]
    %vm70 = vcmask 523264
    %v71 = vsel %vm70, 0.5, 1.0
    %73 = vset.pattern.permute.xlu0 0
    %74 = vperm.xlu0 %73, %v51
    %v75 = vpop.permute.xlu0 %74
    %v78 = vlaneseq
    %v79 = vshrl.u32 %v78, 7
    %v80 = vsub.s32 0, %v79
    %v81 = vrot.slane %v52, %v80
    %v82 = vlaneseq
    %v83 = vshrl.u32 %v82, 7
    %v84 = vsub.s32 1, %v83
    %v85 = vrot.slane %v52, %v84
    %v88 = vmul.f32 %v75, %v81
    %v89 = vmul.f32 %v75, %v85
    %v91 = vlaneseq
    %v92 = vshrl.u32 %v91, 7
    %v93 = vsub.s32 0, %v92
    %v94 = vrot.slane %v53, %v93
    %v95 = vlaneseq
    %v96 = vshrl.u32 %v95, 7
    %v97 = vsub.s32 1, %v96
    %v98 = vrot.slane %v53, %v97
    %v101 = vadd.f32 %v88, %v94
    %v102 = vadd.f32 %v89, %v98
    %v104 = vsel %vm70, 0.0, 0
    %106 = vmatprep.subr.mxu0 %v55
    %107 = vmatpush1.msra.mxu0 %v54
    %108 = vmatprep.subr.mxu0 %v57
    %109 = vmatpush1.msra.mxu0 %v56
    %110 = vmatprep.subr.mxu0 %v59
    %111 = vmatpush1.msra.mxu0 %v58
    %112 = vmatprep.subr.mxu0 %v61
    %113 = vmatpush1.msra.mxu0 %v60
    %114 = vmatprep.subr.mxu0 %v63
    %115 = vmatpush1.msra.mxu0 %v62
    %116 = vmatprep.subr.mxu0 %v65
    %117 = vmatpush1.msra.mxu0 %v64
    %118 = vmatprep.subr.mxu0 %v67
    %119 = vmatpush1.msra.mxu0 %v66
    %120 = vmatprep.subr.mxu0 %v69
    %121 = vmatpush1.msra.mxu0 %v68
    %122 = vmatprep.subr.mxu0 0.0
    %123 = vmatpush1.msra.mxu0 0.0
    %124 = vmatprep.subr.mxu0 0.0
    %125 = vmatpush1.msra.mxu0 0.0
    %126 = vmatprep.subr.mxu0 0.0
    %127 = vmatpush1.msra.mxu0 0.0
    %128 = vmatprep.subr.mxu0 0.0
    %129 = vmatpush1.msra.mxu0 0.0
    %130 = vmatprep.subr.mxu0 0.0
    %131 = vmatpush1.msra.mxu0 0.0
    %132 = vmatprep.subr.mxu0 0.0
    %133 = vmatpush1.msra.mxu0 0.0
    %134 = vmatprep.subr.mxu0 0.0
    %135 = vmatpush1.msra.mxu0 0.0
    %136 = vmatprep.subr.mxu0 0.0
    %137 = vmatpush1.msra.mxu0 0.0
    %138 = vmatprep.subr.mxu0 0.0
    %139 = vmatpush1.msra.mxu0 0.0
    %140 = vmatprep.subr.mxu0 0.0
    %141 = vmatpush1.msra.mxu0 0.0
    %142 = vmatprep.subr.mxu0 0.0
    %143 = vmatpush1.msra.mxu0 0.0
    %144 = vmatprep.subr.mxu0 0.0
    %145 = vmatpush1.msra.mxu0 0.0
    %146 = vmatprep.subr.mxu0 0.0
    %147 = vmatpush1.msra.mxu0 0.0
    %148 = vmatprep.subr.mxu0 0.0
    %149 = vmatpush1.msra.mxu0 0.0
    %150 = vmatprep.subr.mxu0 0.0
    %151 = vmatpush1.msra.mxu0 0.0
    %152 = vmatprep.subr.mxu0 0.0
    %153 = vmatpush1.msra.mxu0 0.0
    %154 = vmatprep.subr.mxu0 0.0
    %155 = vmatpush1.msra.mxu0 0.0
    %156 = vmatprep.subr.mxu0 0.0
    %157 = vmatpush1.msra.mxu0 0.0
    %158 = vmatprep.subr.mxu0 0.0
    %159 = vmatpush1.msra.mxu0 0.0
    %160 = vmatprep.subr.mxu0 0.0
    %161 = vmatpush1.msra.mxu0 0.0
    %162 = vmatprep.subr.mxu0 0.0
    %163 = vmatpush1.msra.mxu0 0.0
    %164 = vmatprep.subr.mxu0 0.0
    %165 = vmatpush1.msra.mxu0 0.0
    %166 = vmatprep.subr.mxu0 0.0
    %167 = vmatpush1.msra.mxu0 0.0
    %168 = vmatprep.subr.mxu0 0.0
    %169 = vmatpush1.msra.mxu0 0.0
    %170 = vmatprep.mubr.f32.mxu0 0.0
    %171 = vmatmul.mubr.f32.gmra.mrb[0].mxu0 %v104
    %v172 = vpop.f32.mrb[0].mxu0
    %v173 = vadd.f32 0.0, %v172
    %v174 = vpop.f32.mrb[0].mxu0
    %v175 = vadd.f32 0.0, %v174
    %176 = vdwg.mxu0
    %v177 = vadd.f32 %v101, %v173
    %v178 = vadd.f32 %v102, %v175
    %v179 = vlaneseq
    %v180 = vshrl.u32 %v179, 7
    %v181 = vsub.s32 0, %v180
    %v182 = vlaneseq
    %v183 = vshrl.u32 %v182, 7
    %v184 = vsub.s32 0, %v183
    %v185 = vrot.slane %v71, %v184
    %v186 = vmul.f32 %v177, 0.5
    %v187 = vmul.f32 %v178, %v185
    %v188 = vtanh.pop %v186
    %v189 = vtanh.pop %v187
    %v190 = vmul.f32 %v188, 0.5
    %v191 = vmul.f32 %v189, 0.5
    %v192 = vadd.f32 %v190, 0.5
    %v193 = vadd.f32 %v191, 0.5
    %v194 = vmul.f32 %v192, 0.0
    %196 = vrot.lane.b32.xlu0 %v189, 64
    %v197 = vpop.permute.xlu0 %196
    %v199 = vmul.f32 %v192, %v197
    %201 = vrot.lane.b32.xlu0 %v199, 64
    %v202 = vpop.permute.xlu0 %201
    %v204 = vadd.f32 %v194, %v202
    %v205 = vtanh.pop %v204
    %207 = vrot.lane.b32.xlu0 %v205, 64
    %v208 = vpop.permute.xlu0 %207
    %v210 = vmul.f32 %v193, %v208
    %211 = vset.pattern.permute.xlu0 1
    %212 = vperm.xlu0 %211, %v51
    %v213 = vpop.permute.xlu0 %212
    %v215 = vmul.f32 %v213, %v81
    %v216 = vmul.f32 %v213, %v85
    %v217 = vadd.f32 %v215, %v94
    %v218 = vadd.f32 %v216, %v98
    %v220 = vsel %vm70, %v210, 0
    %222 = vmatprep.subr.mxu0 %v55
    %223 = vmatpush1.msra.mxu0 %v54
    %224 = vmatprep.subr.mxu0 %v57
    %225 = vmatpush1.msra.mxu0 %v56
    %226 = vmatprep.subr.mxu0 %v59
    %227 = vmatpush1.msra.mxu0 %v58
    %228 = vmatprep.subr.mxu0 %v61
    %229 = vmatpush1.msra.mxu0 %v60
    %230 = vmatprep.subr.mxu0 %v63
    %231 = vmatpush1.msra.mxu0 %v62
    %232 = vmatprep.subr.mxu0 %v65
    %233 = vmatpush1.msra.mxu0 %v64
    %234 = vmatprep.subr.mxu0 %v67
    %235 = vmatpush1.msra.mxu0 %v66
    %236 = vmatprep.subr.mxu0 %v69
    %237 = vmatpush1.msra.mxu0 %v68
    %238 = vmatprep.subr.mxu0 0.0
    %239 = vmatpush1.msra.mxu0 0.0
    %240 = vmatprep.subr.mxu0 0.0
    %241 = vmatpush1.msra.mxu0 0.0
    %242 = vmatprep.subr.mxu0 0.0
    %243 = vmatpush1.msra.mxu0 0.0
    %244 = vmatprep.subr.mxu0 0.0
    %245 = vmatpush1.msra.mxu0 0.0
    %246 = vmatprep.subr.mxu0 0.0
    %247 = vmatpush1.msra.mxu0 0.0
    %248 = vmatprep.subr.mxu0 0.0
    %249 = vmatpush1.msra.mxu0 0.0
    %250 = vmatprep.subr.mxu0 0.0
    %251 = vmatpush1.msra.mxu0 0.0
    %252 = vmatprep.subr.mxu0 0.0
    %253 = vmatpush1.msra.mxu0 0.0
    %254 = vmatprep.subr.mxu0 0.0
    %255 = vmatpush1.msra.mxu0 0.0
    %256 = vmatprep.subr.mxu0 0.0
    %257 = vmatpush1.msra.mxu0 0.0
    %258 = vmatprep.subr.mxu0 0.0
    %259 = vmatpush1.msra.mxu0 0.0
    %260 = vmatprep.subr.mxu0 0.0
    %261 = vmatpush1.msra.mxu0 0.0
    %262 = vmatprep.subr.mxu0 0.0
    %263 = vmatpush1.msra.mxu0 0.0
    %264 = vmatprep.subr.mxu0 0.0
    %265 = vmatpush1.msra.mxu0 0.0
    %266 = vmatprep.subr.mxu0 0.0
    %267 = vmatpush1.msra.mxu0 0.0
    %268 = vmatprep.subr.mxu0 0.0
    %269 = vmatpush1.msra.mxu0 0.0
    %270 = vmatprep.subr.mxu0 0.0
    %271 = vmatpush1.msra.mxu0 0.0
    %272 = vmatprep.subr.mxu0 0.0
    %273 = vmatpush1.msra.mxu0 0.0
    %274 = vmatprep.subr.mxu0 0.0
    %275 = vmatpush1.msra.mxu0 0.0
    %276 = vmatprep.subr.mxu0 0.0
    %277 = vmatpush1.msra.mxu0 0.0
    %278 = vmatprep.subr.mxu0 0.0
    %279 = vmatpush1.msra.mxu0 0.0
    %280 = vmatprep.subr.mxu0 0.0
    %281 = vmatpush1.msra.mxu0 0.0
    %282 = vmatprep.subr.mxu0 0.0
    %283 = vmatpush1.msra.mxu0 0.0
    %284 = vmatprep.subr.mxu0 0.0
    %285 = vmatpush1.msra.mxu0 0.0
    %286 = vmatprep.mubr.f32.mxu0 0.0
    %287 = vmatmul.mubr.f32.gmra.mrb[0].mxu0 %v220
    %v288 = vpop.f32.mrb[0].mxu0
    %v289 = vadd.f32 0.0, %v288
    %v290 = vpop.f32.mrb[0].mxu0
    %v291 = vadd.f32 0.0, %v290
    %292 = vdwg.mxu0
    %v293 = vadd.f32 %v217, %v289
    %v294 = vadd.f32 %v218, %v291
    %v295 = vmul.f32 %v293, 0.5
    %v296 = vmul.f32 %v294, %v185
    %v297 = vtanh.pop %v295
    %v298 = vtanh.pop %v296
    %v299 = vmul.f32 %v297, 0.5
    %v300 = vmul.f32 %v298, 0.5
    %v301 = vadd.f32 %v299, 0.5
    %v302 = vadd.f32 %v300, 0.5
    %v303 = vmul.f32 %v301, %v204
    %305 = vrot.lane.b32.xlu0 %v298, 64
    %v306 = vpop.permute.xlu0 %305
    %v308 = vmul.f32 %v301, %v306
    %310 = vrot.lane.b32.xlu0 %v308, 64
    %v311 = vpop.permute.xlu0 %310
    %v313 = vadd.f32 %v303, %v311
    %v314 = vtanh.pop %v313
    %316 = vrot.lane.b32.xlu0 %v314, 64
    %v317 = vpop.permute.xlu0 %316
    %v319 = vmul.f32 %v302, %v317
    %320 = vset.pattern.permute.xlu0 2
    %321 = vperm.xlu0 %320, %v51
    %v322 = vpop.permute.xlu0 %321
    %v324 = vmul.f32 %v322, %v81
    %v325 = vmul.f32 %v322, %v85
    %v326 = vadd.f32 %v324, %v94
    %v327 = vadd.f32 %v325, %v98
    %v329 = vsel %vm70, %v319, 0
    %331 = vmatprep.subr.mxu0 %v55
    %332 = vmatpush1.msra.mxu0 %v54
    %333 = vmatprep.subr.mxu0 %v57
    %334 = vmatpush1.msra.mxu0 %v56
    %335 = vmatprep.subr.mxu0 %v59
    %336 = vmatpush1.msra.mxu0 %v58
    %337 = vmatprep.subr.mxu0 %v61
    %338 = vmatpush1.msra.mxu0 %v60
    %339 = vmatprep.subr.mxu0 %v63
    %340 = vmatpush1.msra.mxu0 %v62
    %341 = vmatprep.subr.mxu0 %v65
    %342 = vmatpush1.msra.mxu0 %v64
    %343 = vmatprep.subr.mxu0 %v67
    %344 = vmatpush1.msra.mxu0 %v66
    %345 = vmatprep.subr.mxu0 %v69
    %346 = vmatpush1.msra.mxu0 %v68
    %347 = vmatprep.subr.mxu0 0.0
    %348 = vmatpush1.msra.mxu0 0.0
    %349 = vmatprep.subr.mxu0 0.0
    %350 = vmatpush1.msra.mxu0 0.0
    %351 = vmatprep.subr.mxu0 0.0
    %352 = vmatpush1.msra.mxu0 0.0
    %353 = vmatprep.subr.mxu0 0.0
    %354 = vmatpush1.msra.mxu0 0.0
    %355 = vmatprep.subr.mxu0 0.0
    %356 = vmatpush1.msra.mxu0 0.0
    %357 = vmatprep.subr.mxu0 0.0
    %358 = vmatpush1.msra.mxu0 0.0
    %359 = vmatprep.subr.mxu0 0.0
    %360 = vmatpush1.msra.mxu0 0.0
    %361 = vmatprep.subr.mxu0 0.0
    %362 = vmatpush1.msra.mxu0 0.0
    %363 = vmatprep.subr.mxu0 0.0
    %364 = vmatpush1.msra.mxu0 0.0
    %365 = vmatprep.subr.mxu0 0.0
    %366 = vmatpush1.msra.mxu0 0.0
    %367 = vmatprep.subr.mxu0 0.0
    %368 = vmatpush1.msra.mxu0 0.0
    %369 = vmatprep.subr.mxu0 0.0
    %370 = vmatpush1.msra.mxu0 0.0
    %371 = vmatprep.subr.mxu0 0.0
    %372 = vmatpush1.msra.mxu0 0.0
    %373 = vmatprep.subr.mxu0 0.0
    %374 = vmatpush1.msra.mxu0 0.0
    %375 = vmatprep.subr.mxu0 0.0
    %376 = vmatpush1.msra.mxu0 0.0
    %377 = vmatprep.subr.mxu0 0.0
    %378 = vmatpush1.msra.mxu0 0.0
    %379 = vmatprep.subr.mxu0 0.0
    %380 = vmatpush1.msra.mxu0 0.0
    %381 = vmatprep.subr.mxu0 0.0
    %382 = vmatpush1.msra.mxu0 0.0
    %383 = vmatprep.subr.mxu0 0.0
    %384 = vmatpush1.msra.mxu0 0.0
    %385 = vmatprep.subr.mxu0 0.0
    %386 = vmatpush1.msra.mxu0 0.0
    %387 = vmatprep.subr.mxu0 0.0
    %388 = vmatpush1.msra.mxu0 0.0
    %389 = vmatprep.subr.mxu0 0.0
    %390 = vmatpush1.msra.mxu0 0.0
    %391 = vmatprep.subr.mxu0 0.0
    %392 = vmatpush1.msra.mxu0 0.0
    %393 = vmatprep.subr.mxu0 0.0
    %394 = vmatpush1.msra.mxu0 0.0
    %395 = vmatprep.mubr.f32.mxu0 0.0
    %396 = vmatmul.mubr.f32.gmra.mrb[0].mxu0 %v329
    %v397 = vpop.f32.mrb[0].mxu0
    %v398 = vadd.f32 0.0, %v397
    %v399 = vpop.f32.mrb[0].mxu0
    %v400 = vadd.f32 0.0, %v399
    %401 = vdwg.mxu0
    %v402 = vadd.f32 %v326, %v398
    %v403 = vadd.f32 %v327, %v400
    %v404 = vmul.f32 %v402, 0.5
    %v405 = vmul.f32 %v403, %v185
    %v406 = vtanh.pop %v404
    %v407 = vtanh.pop %v405
    %v408 = vmul.f32 %v406, 0.5
    %v409 = vmul.f32 %v407, 0.5
    %v410 = vadd.f32 %v408, 0.5
    %v411 = vadd.f32 %v409, 0.5
    %v412 = vmul.f32 %v410, %v313
    %414 = vrot.lane.b32.xlu0 %v407, 64
    %v415 = vpop.permute.xlu0 %414
    %v417 = vmul.f32 %v410, %v415
    %419 = vrot.lane.b32.xlu0 %v417, 64
    %v420 = vpop.permute.xlu0 %419
    %v422 = vadd.f32 %v412, %v420
    %v423 = vtanh.pop %v422
    %425 = vrot.lane.b32.xlu0 %v423, 64
    %v426 = vpop.permute.xlu0 %425
    %v428 = vmul.f32 %v411, %v426
    %429 = vset.pattern.permute.xlu0 3
    %430 = vperm.xlu0 %429, %v51
    %v431 = vpop.permute.xlu0 %430
    %v433 = vmul.f32 %v431, %v81
    %v434 = vmul.f32 %v431, %v85
    %v435 = vadd.f32 %v433, %v94
    %v436 = vadd.f32 %v434, %v98
    %v438 = vsel %vm70, %v428, 0
    %440 = vmatprep.subr.mxu0 %v55
    %441 = vmatpush1.msra.mxu0 %v54
    %442 = vmatprep.subr.mxu0 %v57
    %443 = vmatpush1.msra.mxu0 %v56
    %444 = vmatprep.subr.mxu0 %v59
    %445 = vmatpush1.msra.mxu0 %v58
    %446 = vmatprep.subr.mxu0 %v61
    %447 = vmatpush1.msra.mxu0 %v60
    %448 = vmatprep.subr.mxu0 %v63
    %449 = vmatpush1.msra.mxu0 %v62
    %450 = vmatprep.subr.mxu0 %v65
    %451 = vmatpush1.msra.mxu0 %v64
    %452 = vmatprep.subr.mxu0 %v67
    %453 = vmatpush1.msra.mxu0 %v66
    %454 = vmatprep.subr.mxu0 %v69
    %455 = vmatpush1.msra.mxu0 %v68
    %456 = vmatprep.subr.mxu0 0.0
    %457 = vmatpush1.msra.mxu0 0.0
    %458 = vmatprep.subr.mxu0 0.0
    %459 = vmatpush1.msra.mxu0 0.0
    %460 = vmatprep.subr.mxu0 0.0
    %461 = vmatpush1.msra.mxu0 0.0
    %462 = vmatprep.subr.mxu0 0.0
    %463 = vmatpush1.msra.mxu0 0.0
    %464 = vmatprep.subr.mxu0 0.0
    %465 = vmatpush1.msra.mxu0 0.0
    %466 = vmatprep.subr.mxu0 0.0
    %467 = vmatpush1.msra.mxu0 0.0
    %468 = vmatprep.subr.mxu0 0.0
    %469 = vmatpush1.msra.mxu0 0.0
    %470 = vmatprep.subr.mxu0 0.0
    %471 = vmatpush1.msra.mxu0 0.0
    %472 = vmatprep.subr.mxu0 0.0
    %473 = vmatpush1.msra.mxu0 0.0
    %474 = vmatprep.subr.mxu0 0.0
    %475 = vmatpush1.msra.mxu0 0.0
    %476 = vmatprep.subr.mxu0 0.0
    %477 = vmatpush1.msra.mxu0 0.0
    %478 = vmatprep.subr.mxu0 0.0
    %479 = vmatpush1.msra.mxu0 0.0
    %480 = vmatprep.subr.mxu0 0.0
    %481 = vmatpush1.msra.mxu0 0.0
    %482 = vmatprep.subr.mxu0 0.0
    %483 = vmatpush1.msra.mxu0 0.0
    %484 = vmatprep.subr.mxu0 0.0
    %485 = vmatpush1.msra.mxu0 0.0
    %486 = vmatprep.subr.mxu0 0.0
    %487 = vmatpush1.msra.mxu0 0.0
    %488 = vmatprep.subr.mxu0 0.0
    %489 = vmatpush1.msra.mxu0 0.0
    %490 = vmatprep.subr.mxu0 0.0
    %491 = vmatpush1.msra.mxu0 0.0
    %492 = vmatprep.subr.mxu0 0.0
    %493 = vmatpush1.msra.mxu0 0.0
    %494 = vmatprep.subr.mxu0 0.0
    %495 = vmatpush1.msra.mxu0 0.0
    %496 = vmatprep.subr.mxu0 0.0
    %497 = vmatpush1.msra.mxu0 0.0
    %498 = vmatprep.subr.mxu0 0.0
    %499 = vmatpush1.msra.mxu0 0.0
    %500 = vmatprep.subr.mxu0 0.0
    %501 = vmatpush1.msra.mxu0 0.0
    %502 = vmatprep.subr.mxu0 0.0
    %503 = vmatpush1.msra.mxu0 0.0
    %504 = vmatprep.mubr.f32.mxu0 0.0
    %505 = vmatmul.mubr.f32.gmra.mrb[0].mxu0 %v438
    %v506 = vpop.f32.mrb[0].mxu0
    %v507 = vadd.f32 0.0, %v506
    %v508 = vpop.f32.mrb[0].mxu0
    %v509 = vadd.f32 0.0, %v508
    %510 = vdwg.mxu0
    %v511 = vadd.f32 %v435, %v507
    %v512 = vadd.f32 %v436, %v509
    %v513 = vmul.f32 %v511, 0.5
    %v514 = vmul.f32 %v512, %v185
    %v515 = vtanh.pop %v513
    %v516 = vtanh.pop %v514
    %v517 = vmul.f32 %v515, 0.5
    %v518 = vmul.f32 %v516, 0.5
    %v519 = vadd.f32 %v517, 0.5
    %v520 = vadd.f32 %v518, 0.5
    %v521 = vmul.f32 %v519, %v422
    %523 = vrot.lane.b32.xlu0 %v516, 64
    %v524 = vpop.permute.xlu0 %523
    %v526 = vmul.f32 %v519, %v524
    %528 = vrot.lane.b32.xlu0 %v526, 64
    %v529 = vpop.permute.xlu0 %528
    %v531 = vadd.f32 %v521, %v529
    %v532 = vtanh.pop %v531
    %534 = vrot.lane.b32.xlu0 %v532, 64
    %v535 = vpop.permute.xlu0 %534
    %v537 = vmul.f32 %v520, %v535
    %538 = vset.pattern.permute.xlu0 4
    %539 = vperm.xlu0 %538, %v51
    %v540 = vpop.permute.xlu0 %539
    %v542 = vmul.f32 %v540, %v81
    %v543 = vmul.f32 %v540, %v85
    %v544 = vadd.f32 %v542, %v94
    %v545 = vadd.f32 %v543, %v98
    %v547 = vsel %vm70, %v537, 0
    %549 = vmatprep.subr.mxu0 %v55
    %550 = vmatpush1.msra.mxu0 %v54
    %551 = vmatprep.subr.mxu0 %v57
    %552 = vmatpush1.msra.mxu0 %v56
    %553 = vmatprep.subr.mxu0 %v59
    %554 = vmatpush1.msra.mxu0 %v58
    %555 = vmatprep.subr.mxu0 %v61
    %556 = vmatpush1.msra.mxu0 %v60
    %557 = vmatprep.subr.mxu0 %v63
    %558 = vmatpush1.msra.mxu0 %v62
    %559 = vmatprep.subr.mxu0 %v65
    %560 = vmatpush1.msra.mxu0 %v64
    %561 = vmatprep.subr.mxu0 %v67
    %562 = vmatpush1.msra.mxu0 %v66
    %563 = vmatprep.subr.mxu0 %v69
    %564 = vmatpush1.msra.mxu0 %v68
    %565 = vmatprep.subr.mxu0 0.0
    %566 = vmatpush1.msra.mxu0 0.0
    %567 = vmatprep.subr.mxu0 0.0
    %568 = vmatpush1.msra.mxu0 0.0
    %569 = vmatprep.subr.mxu0 0.0
    %570 = vmatpush1.msra.mxu0 0.0
    %571 = vmatprep.subr.mxu0 0.0
    %572 = vmatpush1.msra.mxu0 0.0
    %573 = vmatprep.subr.mxu0 0.0
    %574 = vmatpush1.msra.mxu0 0.0
    %575 = vmatprep.subr.mxu0 0.0
    %576 = vmatpush1.msra.mxu0 0.0
    %577 = vmatprep.subr.mxu0 0.0
    %578 = vmatpush1.msra.mxu0 0.0
    %579 = vmatprep.subr.mxu0 0.0
    %580 = vmatpush1.msra.mxu0 0.0
    %581 = vmatprep.subr.mxu0 0.0
    %582 = vmatpush1.msra.mxu0 0.0
    %583 = vmatprep.subr.mxu0 0.0
    %584 = vmatpush1.msra.mxu0 0.0
    %585 = vmatprep.subr.mxu0 0.0
    %586 = vmatpush1.msra.mxu0 0.0
    %587 = vmatprep.subr.mxu0 0.0
    %588 = vmatpush1.msra.mxu0 0.0
    %589 = vmatprep.subr.mxu0 0.0
    %590 = vmatpush1.msra.mxu0 0.0
    %591 = vmatprep.subr.mxu0 0.0
    %592 = vmatpush1.msra.mxu0 0.0
    %593 = vmatprep.subr.mxu0 0.0
    %594 = vmatpush1.msra.mxu0 0.0
    %595 = vmatprep.subr.mxu0 0.0
    %596 = vmatpush1.msra.mxu0 0.0
    %597 = vmatprep.subr.mxu0 0.0
    %598 = vmatpush1.msra.mxu0 0.0
    %599 = vmatprep.subr.mxu0 0.0
    %600 = vmatpush1.msra.mxu0 0.0
    %601 = vmatprep.subr.mxu0 0.0
    %602 = vmatpush1.msra.mxu0 0.0
    %603 = vmatprep.subr.mxu0 0.0
    %604 = vmatpush1.msra.mxu0 0.0
    %605 = vmatprep.subr.mxu0 0.0
    %606 = vmatpush1.msra.mxu0 0.0
    %607 = vmatprep.subr.mxu0 0.0
    %608 = vmatpush1.msra.mxu0 0.0
    %609 = vmatprep.subr.mxu0 0.0
    %610 = vmatpush1.msra.mxu0 0.0
    %611 = vmatprep.subr.mxu0 0.0
    %612 = vmatpush1.msra.mxu0 0.0
    %613 = vmatprep.mubr.f32.mxu0 0.0
    %614 = vmatmul.mubr.f32.gmra.mrb[0].mxu0 %v547
    %v615 = vpop.f32.mrb[0].mxu0
    %v616 = vadd.f32 0.0, %v615
    %v617 = vpop.f32.mrb[0].mxu0
    %v618 = vadd.f32 0.0, %v617
    %619 = vdwg.mxu0
    %v620 = vadd.f32 %v544, %v616
    %v621 = vadd.f32 %v545, %v618
    %v622 = vmul.f32 %v620, 0.5
    %v623 = vmul.f32 %v621, %v185
    %v624 = vtanh.pop %v622
    %v625 = vtanh.pop %v623
    %v626 = vmul.f32 %v624, 0.5
    %v627 = vmul.f32 %v625, 0.5
    %v628 = vadd.f32 %v626, 0.5
    %v629 = vadd.f32 %v627, 0.5
    %v630 = vmul.f32 %v628, %v531
    %632 = vrot.lane.b32.xlu0 %v625, 64
    %v633 = vpop.permute.xlu0 %632
    %v635 = vmul.f32 %v628, %v633
    %637 = vrot.lane.b32.xlu0 %v635, 64
    %v638 = vpop.permute.xlu0 %637
    %v640 = vadd.f32 %v630, %v638
    %v641 = vtanh.pop %v640
    %643 = vrot.lane.b32.xlu0 %v641, 64
    %v644 = vpop.permute.xlu0 %643
    %v646 = vmul.f32 %v629, %v644
    %647 = vset.pattern.permute.xlu0 5
    %648 = vperm.xlu0 %647, %v51
    %v649 = vpop.permute.xlu0 %648
    %v651 = vmul.f32 %v649, %v81
    %v652 = vmul.f32 %v649, %v85
    %v653 = vadd.f32 %v651, %v94
    %v654 = vadd.f32 %v652, %v98
    %v656 = vsel %vm70, %v646, 0
    %658 = vmatprep.subr.mxu0 %v55
    %659 = vmatpush1.msra.mxu0 %v54
    %660 = vmatprep.subr.mxu0 %v57
    %661 = vmatpush1.msra.mxu0 %v56
    %662 = vmatprep.subr.mxu0 %v59
    %663 = vmatpush1.msra.mxu0 %v58
    %664 = vmatprep.subr.mxu0 %v61
    %665 = vmatpush1.msra.mxu0 %v60
    %666 = vmatprep.subr.mxu0 %v63
    %667 = vmatpush1.msra.mxu0 %v62
    %668 = vmatprep.subr.mxu0 %v65
    %669 = vmatpush1.msra.mxu0 %v64
    %670 = vmatprep.subr.mxu0 %v67
    %671 = vmatpush1.msra.mxu0 %v66
    %672 = vmatprep.subr.mxu0 %v69
    %673 = vmatpush1.msra.mxu0 %v68
    %674 = vmatprep.subr.mxu0 0.0
    %675 = vmatpush1.msra.mxu0 0.0
    %676 = vmatprep.subr.mxu0 0.0
    %677 = vmatpush1.msra.mxu0 0.0
    %678 = vmatprep.subr.mxu0 0.0
    %679 = vmatpush1.msra.mxu0 0.0
    %680 = vmatprep.subr.mxu0 0.0
    %681 = vmatpush1.msra.mxu0 0.0
    %682 = vmatprep.subr.mxu0 0.0
    %683 = vmatpush1.msra.mxu0 0.0
    %684 = vmatprep.subr.mxu0 0.0
    %685 = vmatpush1.msra.mxu0 0.0
    %686 = vmatprep.subr.mxu0 0.0
    %687 = vmatpush1.msra.mxu0 0.0
    %688 = vmatprep.subr.mxu0 0.0
    %689 = vmatpush1.msra.mxu0 0.0
    %690 = vmatprep.subr.mxu0 0.0
    %691 = vmatpush1.msra.mxu0 0.0
    %692 = vmatprep.subr.mxu0 0.0
    %693 = vmatpush1.msra.mxu0 0.0
    %694 = vmatprep.subr.mxu0 0.0
    %695 = vmatpush1.msra.mxu0 0.0
    %696 = vmatprep.subr.mxu0 0.0
    %697 = vmatpush1.msra.mxu0 0.0
    %698 = vmatprep.subr.mxu0 0.0
    %699 = vmatpush1.msra.mxu0 0.0
    %700 = vmatprep.subr.mxu0 0.0
    %701 = vmatpush1.msra.mxu0 0.0
    %702 = vmatprep.subr.mxu0 0.0
    %703 = vmatpush1.msra.mxu0 0.0
    %704 = vmatprep.subr.mxu0 0.0
    %705 = vmatpush1.msra.mxu0 0.0
    %706 = vmatprep.subr.mxu0 0.0
    %707 = vmatpush1.msra.mxu0 0.0
    %708 = vmatprep.subr.mxu0 0.0
    %709 = vmatpush1.msra.mxu0 0.0
    %710 = vmatprep.subr.mxu0 0.0
    %711 = vmatpush1.msra.mxu0 0.0
    %712 = vmatprep.subr.mxu0 0.0
    %713 = vmatpush1.msra.mxu0 0.0
    %714 = vmatprep.subr.mxu0 0.0
    %715 = vmatpush1.msra.mxu0 0.0
    %716 = vmatprep.subr.mxu0 0.0
    %717 = vmatpush1.msra.mxu0 0.0
    %718 = vmatprep.subr.mxu0 0.0
    %719 = vmatpush1.msra.mxu0 0.0
    %720 = vmatprep.subr.mxu0 0.0
    %721 = vmatpush1.msra.mxu0 0.0
    %722 = vmatprep.mubr.f32.mxu0 0.0
    %723 = vmatmul.mubr.f32.gmra.mrb[0].mxu0 %v656
    %v724 = vpop.f32.mrb[0].mxu0
    %v725 = vadd.f32 0.0, %v724
    %v726 = vpop.f32.mrb[0].mxu0
    %v727 = vadd.f32 0.0, %v726
    %728 = vdwg.mxu0
    %v729 = vadd.f32 %v653, %v725
    %v730 = vadd.f32 %v654, %v727
    %v731 = vmul.f32 %v729, 0.5
    %v732 = vmul.f32 %v730, %v185
    %v733 = vtanh.pop %v731
    %v734 = vtanh.pop %v732
    %v735 = vmul.f32 %v733, 0.5
    %v736 = vmul.f32 %v734, 0.5
    %v737 = vadd.f32 %v735, 0.5
    %v738 = vadd.f32 %v736, 0.5
    %v739 = vmul.f32 %v737, %v640
    %741 = vrot.lane.b32.xlu0 %v734, 64
    %v742 = vpop.permute.xlu0 %741
    %v744 = vmul.f32 %v737, %v742
    %746 = vrot.lane.b32.xlu0 %v744, 64
    %v747 = vpop.permute.xlu0 %746
    %v749 = vadd.f32 %v739, %v747
    %v750 = vtanh.pop %v749
    %752 = vrot.lane.b32.xlu0 %v750, 64
    %v753 = vpop.permute.xlu0 %752
    %v755 = vmul.f32 %v738, %v753
    %756 = vset.pattern.permute.xlu0 6
    %757 = vperm.xlu0 %756, %v51
    %v758 = vpop.permute.xlu0 %757
    %v760 = vmul.f32 %v758, %v81
    %v761 = vmul.f32 %v758, %v85
    %v762 = vadd.f32 %v760, %v94
    %v763 = vadd.f32 %v761, %v98
    %v765 = vsel %vm70, %v755, 0
    %767 = vmatprep.subr.mxu0 %v55
    %768 = vmatpush1.msra.mxu0 %v54
    %769 = vmatprep.subr.mxu0 %v57
    %770 = vmatpush1.msra.mxu0 %v56
    %771 = vmatprep.subr.mxu0 %v59
    %772 = vmatpush1.msra.mxu0 %v58
    %773 = vmatprep.subr.mxu0 %v61
    %774 = vmatpush1.msra.mxu0 %v60
    %775 = vmatprep.subr.mxu0 %v63
    %776 = vmatpush1.msra.mxu0 %v62
    %777 = vmatprep.subr.mxu0 %v65
    %778 = vmatpush1.msra.mxu0 %v64
    %779 = vmatprep.subr.mxu0 %v67
    %780 = vmatpush1.msra.mxu0 %v66
    %781 = vmatprep.subr.mxu0 %v69
    %782 = vmatpush1.msra.mxu0 %v68
    %783 = vmatprep.subr.mxu0 0.0
    %784 = vmatpush1.msra.mxu0 0.0
    %785 = vmatprep.subr.mxu0 0.0
    %786 = vmatpush1.msra.mxu0 0.0
    %787 = vmatprep.subr.mxu0 0.0
    %788 = vmatpush1.msra.mxu0 0.0
    %789 = vmatprep.subr.mxu0 0.0
    %790 = vmatpush1.msra.mxu0 0.0
    %791 = vmatprep.subr.mxu0 0.0
    %792 = vmatpush1.msra.mxu0 0.0
    %793 = vmatprep.subr.mxu0 0.0
    %794 = vmatpush1.msra.mxu0 0.0
    %795 = vmatprep.subr.mxu0 0.0
    %796 = vmatpush1.msra.mxu0 0.0
    %797 = vmatprep.subr.mxu0 0.0
    %798 = vmatpush1.msra.mxu0 0.0
    %799 = vmatprep.subr.mxu0 0.0
    %800 = vmatpush1.msra.mxu0 0.0
    %801 = vmatprep.subr.mxu0 0.0
    %802 = vmatpush1.msra.mxu0 0.0
    %803 = vmatprep.subr.mxu0 0.0
    %804 = vmatpush1.msra.mxu0 0.0
    %805 = vmatprep.subr.mxu0 0.0
    %806 = vmatpush1.msra.mxu0 0.0
    %807 = vmatprep.subr.mxu0 0.0
    %808 = vmatpush1.msra.mxu0 0.0
    %809 = vmatprep.subr.mxu0 0.0
    %810 = vmatpush1.msra.mxu0 0.0
    %811 = vmatprep.subr.mxu0 0.0
    %812 = vmatpush1.msra.mxu0 0.0
    %813 = vmatprep.subr.mxu0 0.0
    %814 = vmatpush1.msra.mxu0 0.0
    %815 = vmatprep.subr.mxu0 0.0
    %816 = vmatpush1.msra.mxu0 0.0
    %817 = vmatprep.subr.mxu0 0.0
    %818 = vmatpush1.msra.mxu0 0.0
    %819 = vmatprep.subr.mxu0 0.0
    %820 = vmatpush1.msra.mxu0 0.0
    %821 = vmatprep.subr.mxu0 0.0
    %822 = vmatpush1.msra.mxu0 0.0
    %823 = vmatprep.subr.mxu0 0.0
    %824 = vmatpush1.msra.mxu0 0.0
    %825 = vmatprep.subr.mxu0 0.0
    %826 = vmatpush1.msra.mxu0 0.0
    %827 = vmatprep.subr.mxu0 0.0
    %828 = vmatpush1.msra.mxu0 0.0
    %829 = vmatprep.subr.mxu0 0.0
    %830 = vmatpush1.msra.mxu0 0.0
    %831 = vmatprep.mubr.f32.mxu0 0.0
    %832 = vmatmul.mubr.f32.gmra.mrb[0].mxu0 %v765
    %v833 = vpop.f32.mrb[0].mxu0
    %v834 = vadd.f32 0.0, %v833
    %v835 = vpop.f32.mrb[0].mxu0
    %v836 = vadd.f32 0.0, %v835
    %837 = vdwg.mxu0
    %v838 = vadd.f32 %v762, %v834
    %v839 = vadd.f32 %v763, %v836
    %v840 = vmul.f32 %v838, 0.5
    %v841 = vmul.f32 %v839, %v185
    %v842 = vtanh.pop %v840
    %v843 = vtanh.pop %v841
    %v844 = vmul.f32 %v842, 0.5
    %v845 = vmul.f32 %v843, 0.5
    %v846 = vadd.f32 %v844, 0.5
    %v847 = vadd.f32 %v845, 0.5
    %v848 = vmul.f32 %v846, %v749
    %850 = vrot.lane.b32.xlu0 %v843, 64
    %v851 = vpop.permute.xlu0 %850
    %v853 = vmul.f32 %v846, %v851
    %855 = vrot.lane.b32.xlu0 %v853, 64
    %v856 = vpop.permute.xlu0 %855
    %v858 = vadd.f32 %v848, %v856
    %v859 = vtanh.pop %v858
    %861 = vrot.lane.b32.xlu0 %v859, 64
    %v862 = vpop.permute.xlu0 %861
    %v864 = vmul.f32 %v847, %v862
    %865 = vset.pattern.permute.xlu0 7
    %866 = vperm.xlu0 %865, %v51
    %v867 = vpop.permute.xlu0 %866
    %v869 = vmul.f32 %v867, %v81
    %v870 = vmul.f32 %v867, %v85
    %v871 = vadd.f32 %v869, %v94
    %v872 = vadd.f32 %v870, %v98
    %v874 = vsel %vm70, %v864, 0
    %876 = vmatprep.subr.mxu0 %v55
    %877 = vmatpush1.msra.mxu0 %v54
    %878 = vmatprep.subr.mxu0 %v57
    %879 = vmatpush1.msra.mxu0 %v56
    %880 = vmatprep.subr.mxu0 %v59
    %881 = vmatpush1.msra.mxu0 %v58
    %882 = vmatprep.subr.mxu0 %v61
    %883 = vmatpush1.msra.mxu0 %v60
    %884 = vmatprep.subr.mxu0 %v63
    %885 = vmatpush1.msra.mxu0 %v62
    %886 = vmatprep.subr.mxu0 %v65
    %887 = vmatpush1.msra.mxu0 %v64
    %888 = vmatprep.subr.mxu0 %v67
    %889 = vmatpush1.msra.mxu0 %v66
    %890 = vmatprep.subr.mxu0 %v69
    %891 = vmatpush1.msra.mxu0 %v68
    %892 = vmatprep.subr.mxu0 0.0
    %893 = vmatpush1.msra.mxu0 0.0
    %894 = vmatprep.subr.mxu0 0.0
    %895 = vmatpush1.msra.mxu0 0.0
    %896 = vmatprep.subr.mxu0 0.0
    %897 = vmatpush1.msra.mxu0 0.0
    %898 = vmatprep.subr.mxu0 0.0
    %899 = vmatpush1.msra.mxu0 0.0
    %900 = vmatprep.subr.mxu0 0.0
    %901 = vmatpush1.msra.mxu0 0.0
    %902 = vmatprep.subr.mxu0 0.0
    %903 = vmatpush1.msra.mxu0 0.0
    %904 = vmatprep.subr.mxu0 0.0
    %905 = vmatpush1.msra.mxu0 0.0
    %906 = vmatprep.subr.mxu0 0.0
    %907 = vmatpush1.msra.mxu0 0.0
    %908 = vmatprep.subr.mxu0 0.0
    %909 = vmatpush1.msra.mxu0 0.0
    %910 = vmatprep.subr.mxu0 0.0
    %911 = vmatpush1.msra.mxu0 0.0
    %912 = vmatprep.subr.mxu0 0.0
    %913 = vmatpush1.msra.mxu0 0.0
    %914 = vmatprep.subr.mxu0 0.0
    %915 = vmatpush1.msra.mxu0 0.0
    %916 = vmatprep.subr.mxu0 0.0
    %917 = vmatpush1.msra.mxu0 0.0
    %918 = vmatprep.subr.mxu0 0.0
    %919 = vmatpush1.msra.mxu0 0.0
    %920 = vmatprep.subr.mxu0 0.0
    %921 = vmatpush1.msra.mxu0 0.0
    %922 = vmatprep.subr.mxu0 0.0
    %923 = vmatpush1.msra.mxu0 0.0
    %924 = vmatprep.subr.mxu0 0.0
    %925 = vmatpush1.msra.mxu0 0.0
    %926 = vmatprep.subr.mxu0 0.0
    %927 = vmatpush1.msra.mxu0 0.0
    %928 = vmatprep.subr.mxu0 0.0
    %929 = vmatpush1.msra.mxu0 0.0
    %930 = vmatprep.subr.mxu0 0.0
    %931 = vmatpush1.msra.mxu0 0.0
    %932 = vmatprep.subr.mxu0 0.0
    %933 = vmatpush1.msra.mxu0 0.0
    %934 = vmatprep.subr.mxu0 0.0
    %935 = vmatpush1.msra.mxu0 0.0
    %936 = vmatprep.subr.mxu0 0.0
    %937 = vmatpush1.msra.mxu0 0.0
    %938 = vmatprep.subr.mxu0 0.0
    %939 = vmatpush1.msra.mxu0 0.0
    %940 = vmatprep.mubr.f32.mxu0 0.0
    %941 = vmatmul.mubr.f32.gmra.mrb[0].mxu0 %v874
    %v942 = vpop.f32.mrb[0].mxu0
    %v943 = vadd.f32 0.0, %v942
    %v944 = vpop.f32.mrb[0].mxu0
    %v945 = vadd.f32 0.0, %v944
    %946 = vdwg.mxu0
    %v947 = vadd.f32 %v871, %v943
    %v948 = vadd.f32 %v872, %v945
    %v949 = vmul.f32 %v947, 0.5
    %v950 = vmul.f32 %v948, %v185
    %v951 = vtanh.pop %v949
    %v952 = vtanh.pop %v950
    %v953 = vmul.f32 %v951, 0.5
    %v954 = vmul.f32 %v952, 0.5
    %v955 = vadd.f32 %v953, 0.5
    %v956 = vadd.f32 %v954, 0.5
    %v957 = vmul.f32 %v955, %v858
    %959 = vrot.lane.b32.xlu0 %v952, 64
    %v960 = vpop.permute.xlu0 %959
    %v962 = vmul.f32 %v955, %v960
    %964 = vrot.lane.b32.xlu0 %v962, 64
    %v965 = vpop.permute.xlu0 %964
    %v967 = vadd.f32 %v957, %v965
    %v968 = vtanh.pop %v967
    %970 = vrot.lane.b32.xlu0 %v968, 64
    %v971 = vpop.permute.xlu0 %970
    %v973 = vmul.f32 %v956, %v971
    %v974 = vld [vmem:[%s4] sm:$0x1]
    %v976 = vlaneseq
    %v977 = vshrl.u32 %v976, 7
    %v978 = vsub.s32 0, %v977
    %v979 = vrot.slane %v974, %v978
    %v981 = vmul.f32 %v973, %v979
    %v982 = vsel %vm70, %v981, 0.0
    %983 = vadd.xlane.f32.xlu0 %v982
    %v984 = vpop.xlane.xlu0 %983
    %v985 = vld [vmem:[#allocation2] sm:$0x1]
    %v987 = vlaneseq
    %v988 = vshrl.u32 %v987, 7
    %v989 = vsub.s32 0, %v988
    %v990 = vrot.slane %v985, %v989
    %v992 = vadd.f32 %v984, %v990
    %vm993 = vcmask 7168
    %994 = vst.msk [vmem:[%s6] sm:$0xff] %vm993, %v992
    // Predicated region
    $region34: #{lstm_model_forward.1} parent=1 // pred_check
      _
    $region35: #{lstm_model_forward.1} parent=1 // pred_check_branch
      %996 = sbr.rel (0) target = $region37
    $region36: #{lstm_model_forward.1} parent=1 // pred_region
      _
    $region37: #{lstm_model_forward.1} parent=1 // pred_fallthru
      _
    // Predicated region
    $region38: #{lstm_model_forward.1} parent=1 // pred_check
      _
    $region39: #{lstm_model_forward.1} parent=1 // pred_check_branch
      %998 = sbr.rel (0) target = $region41
    $region40: #{lstm_model_forward.1} parent=1 // pred_region
      _
    $region41: #{lstm_model_forward.1} parent=1 // pred_fallthru
      _
    %999 = vsyncpa [#allocation4], 1
    %1000 = vsyncpa [#allocation6], 1

</llo_original>
